<compile_context>
chip_gen: v5e
topology: v5e:2x2
jax: 0.10.0
libtpu: 0.0.40
codegen_flags: <defaults>
</compile_context>

<pallas_src>
import jax
import jax.numpy as jnp
from jax import lax
from jax.experimental import pallas as pl
from jax.experimental.pallas import tpu as pltpu

LANE = 128   # TPU vreg lane width
SUB = 8      # TPU vreg sublane count (f32)


def _per_element_loss(x, gan_type, target_is_real, real_label_val,
                      fake_label_val):
    """Elementwise loss (pre-mean), matching the PyTorch module."""
    t = float(real_label_val) if target_is_real else float(fake_label_val)
    if gan_type in ("gan", "ragan"):
        # BCEWithLogitsLoss vs constant target t (numerically stable form).
        return jnp.maximum(x, 0.0) - x * t + jnp.log1p(jnp.exp(-jnp.abs(x)))
    if gan_type == "lsgan":
        d = x - t
        return d * d
    if gan_type == "wgan-gp":
        # -mean(x) if real else mean(x)
        return -x if target_is_real else x
    if gan_type == "logistic":
        # softplus(-x).mean() if real else softplus(x).mean()
        z = -x if target_is_real else x
        return jnp.maximum(z, 0.0) + jnp.log1p(jnp.exp(-jnp.abs(z)))
    if gan_type == "patch-recur":
        # L1Loss(reduction='mean') vs constant target t
        return jnp.abs(x - t)
    raise NotImplementedError("GAN type [{:s}] is not found".format(gan_type))


def _default_num_cores():
    """2 TensorCores per chip only on v7x-class parts; 1 elsewhere."""
    try:
        kind = jax.devices()[0].device_kind.lower()
    except Exception:
        return 1
    return 2 if ("v7" in kind or "tpu7" in kind) else 1


def _make_kernel(gan_type, target_is_real, real_label_val, fake_label_val, *,
                 n, block_rows, chunk_rows, blocks_per_core, total_blocks,
                 two_axis):
    """Kernel accumulating per-lane partial sums into an (8,128) out block."""
    gan_type = gan_type.lower()
    block_elems = block_rows * LANE
    chunk_elems = chunk_rows * LANE
    num_chunks = block_rows // chunk_rows
    # Static: does any grid block contain padded / out-of-bounds elements?
    has_tail = total_blocks * block_elems != n
    first_tail_block = n // block_elems   # first global block needing a mask

    def kernel(x_ref, o_ref):
        if two_axis:
            b = pl.program_id(1)
            g = pl.program_id(0) * blocks_per_core + b   # global block index
        else:
            b = pl.program_id(0)
            g = b

        @pl.when(b == 0)
        def _init():
            o_ref[...] = jnp.zeros_like(o_ref)

        def loss_of(vals):
            return _per_element_loss(vals.astype(jnp.float32), gan_type,
                                     target_is_real, real_label_val,
                                     fake_label_val)

        def fold(vals, acc):
            # (chunk_rows,128) -> (chunk_rows/8, 8, 128) summed over leading
            # axis: per-vreg VPU adds only (preserves (8,128) minor tiles).
            return acc + jnp.sum(vals.reshape(-1, SUB, LANE), axis=0)

        zero = jnp.zeros((SUB, LANE), jnp.float32)

        def clean_chunk(ci, acc):
            start = pl.multiple_of(ci * chunk_rows, chunk_rows)
            return fold(loss_of(x_ref[pl.ds(start, chunk_rows), :]), acc)

        if has_tail:
            if first_tail_block > 0:
                @pl.when(g < first_tail_block)
                def _clean():
                    o_ref[...] += lax.fori_loop(0, num_chunks, clean_chunk,
                                                zero)

            @pl.when(g >= first_tail_block)
            def _tail():
                # Chunk-local element offsets, hoisted out of the loop
                # (JAX does not CSE broadcasted iotas inside loop bodies).
                local = (lax.broadcasted_iota(jnp.int32,
                                              (chunk_rows, LANE), 0) * LANE
                         + lax.broadcasted_iota(jnp.int32,
                                                (chunk_rows, LANE), 1))
                base = g * block_elems

                def masked_chunk(ci, acc):
                    start = pl.multiple_of(ci * chunk_rows, chunk_rows)
                    per = loss_of(x_ref[pl.ds(start, chunk_rows), :])
                    idx = base + ci * chunk_elems + local
                    # Keep this a select (jnp.where), never a multiply:
                    # pad zeros and OOB garbage/NaN must not leak.
                    return fold(jnp.where(idx < n, per, 0.0), acc)

                o_ref[...] += lax.fori_loop(0, num_chunks, masked_chunk, zero)
        else:
            o_ref[...] += lax.fori_loop(0, num_chunks, clean_chunk, zero)

    return kernel


def gan_loss(x, gan_type, target_is_real, real_label_val=1.0,
             fake_label_val=0.0, *, tile_rows=8192, chunk_rows=128,
             num_cores=None):
    """Pallas equivalent of GANLoss(gan_type, ...)(x, target_is_real)."""
    x = jnp.asarray(x)
    n = int(x.size)
    if n == 0:
        raise ValueError("gan_loss: empty input")
    if num_cores is None:
        num_cores = _default_num_cores()
    num_cores = int(num_cores)

    rows_needed = -(-n // LANE)
    chunk_rows = max(8, (int(chunk_rows) // 8) * 8)   # sublane-aligned

    if rows_needed <= chunk_rows:
        # Tiny input: one chunk, one block.  Padding here is <= a few KiB so
        # the (cheap) jnp.pad copy is irrelevant.
        block_rows = chunk_rows
        rows = block_rows
    else:
        tile = max(chunk_rows, (int(tile_rows) // chunk_rows) * chunk_rows)
        block_rows = min(tile, (rows_needed // chunk_rows) * chunk_rows)
        rows = rows_needed          # no row padding for large inputs

    num_blocks = -(-rows // block_rows)
    cores = num_cores if (num_cores > 1 and num_blocks >= num_cores) else 1
    blocks_per_core = -(-num_blocks // cores)
    total_blocks = cores * blocks_per_core

    # Only pad to the next lane multiple (and, for tiny inputs, to one chunk).
    # For the common n % 128 == 0 large-input case this is a no-op: no extra
    # HBM read+write of the logits before the kernel.
    pad = rows * LANE - n
    flat = x.reshape(-1)                 # native dtype (bf16 stays bf16)
    if pad:
        flat = jnp.pad(flat, (0, pad))
    x2 = flat.reshape(rows, LANE)

    kernel = _make_kernel(gan_type, bool(target_is_real), real_label_val,
                          fake_label_val, n=n, block_rows=block_rows,
                          chunk_rows=chunk_rows,
                          blocks_per_core=blocks_per_core,
                          total_blocks=total_blocks, two_axis=(cores > 1))

    if cores == 1:
        grid = (num_blocks,)
        in_spec = pl.BlockSpec((block_rows, LANE), lambda b: (b, 0))
        out_spec = pl.BlockSpec((SUB, LANE), lambda b: (0, 0))
        dims = ("arbitrary",)
    else:
        grid = (cores, blocks_per_core)
        if total_blocks == num_blocks:
            in_spec = pl.BlockSpec(
                (block_rows, LANE),
                lambda c, b, B=blocks_per_core: (c * B + b, 0))
        else:
            # Rounded-up grid has block(s) past the end of the data: clamp the
            # input index to the last real block (no fully-OOB DMA); those
            # blocks are fully masked to zero inside the kernel.
            in_spec = pl.BlockSpec(
                (block_rows, LANE),
                lambda c, b, B=blocks_per_core, L=num_blocks - 1:
                    (jnp.minimum(c * B + b, L), 0))
        out_spec = pl.BlockSpec((SUB, LANE), lambda c, b: (c, 0))
        dims = ("parallel", "arbitrary")

    partials = pl.pallas_call(
        kernel,
        out_shape=jax.ShapeDtypeStruct((cores * SUB, LANE), jnp.float32),
        grid_spec=pltpu.PrefetchScalarGridSpec(
            num_scalar_prefetch=0,
            grid=grid,
            in_specs=[in_spec],
            out_specs=out_spec,
        ),
        compiler_params=pltpu.CompilerParams(dimension_semantics=dims),
    )(x2)

    # Tiny final cross-lane reduction + mean scaling outside the kernel
    # (single fused XLA op over at most (16,128) f32 values).
    return jnp.sum(partials) * (1.0 / n)


def _reference(x, gan_type, target_is_real, real=1.0, fake=0.0):
    """Pure-JAX reference mirroring the PyTorch module."""
    x = jnp.asarray(x, jnp.float32)
    per = _per_element_loss(x, gan_type.lower(), bool(target_is_real),
                            real, fake)
    return jnp.mean(per)


if __name__ == "__main__":
    key = jax.random.PRNGKey(0)
    # discriminator logits, NCHW like the PyTorch module would receive
    x = jax.random.normal(key, (2, 4, 16, 16), dtype=jnp.float32)

    ok = True
    for gan_type in ("gan", "ragan", "lsgan", "wgan-gp", "logistic",
                     "patch-recur"):
        for target_is_real in (True, False):
            got = jax.block_until_ready(gan_loss(x, gan_type, target_is_real))
            want = _reference(x, gan_type, target_is_real)
            if not jnp.allclose(got, want, rtol=1e-5, atol=1e-5):
                ok = False
                print("MISMATCH", gan_type, target_is_real,
                      float(got), float(want))

    # bf16 logits exercise the native-dtype (halved HBM bytes) load path.
    xb = x.astype(jnp.bfloat16)
    got = jax.block_until_ready(gan_loss(xb, "gan", True))
    want = _reference(xb, "gan", True)
    if not jnp.allclose(got, want, rtol=1e-4, atol=1e-4):
        ok = False
        print("MISMATCH bf16", float(got), float(want))

    # Multi-block + ragged-tail masking path with deliberately tiny tiles
    # (correctness only; the perf path uses 8192-row blocks / 128-row chunks).
    x_odd = jax.random.normal(jax.random.PRNGKey(1), (2, 1, 30, 50),
                              dtype=jnp.float32)
    for gan_type in ("gan", "lsgan"):
        got = jax.block_until_ready(
            gan_loss(x_odd, gan_type, True, tile_rows=8, chunk_rows=8))
        want = _reference(x_odd, gan_type, True)
        if not jnp.allclose(got, want, rtol=1e-5, atol=1e-5):
            ok = False
            print("MISMATCH ragged", gan_type, float(got), float(want))

    # Forced 2-core split with an odd block count: exercises the clamped
    # index_map + fully-masked extra block (the v7x sharding layout).
    x_even = jax.random.normal(jax.random.PRNGKey(2), (2, 4, 16, 20),
                               dtype=jnp.float32)   # 2560 elems = 20 rows
    got = jax.block_until_ready(
        gan_loss(x_even, "logistic", False, tile_rows=8, chunk_rows=8,
                 num_cores=2))
    want = _reference(x_even, "logistic", False)
    if not jnp.allclose(got, want, rtol=1e-5, atol=1e-5):
        ok = False
        print("MISMATCH 2core", float(got), float(want))

    if ok:
        print("KERNEL_OK")
</pallas_src>

<mosaic_0001>
module attributes {stable_mosaic.version = 11 : i64} {
  func.func @kernel(%arg0: i32, %arg1: memref<128x128xf32, #tpu.memory_space<vmem>>, %arg2: memref<8x128xf32, #tpu.memory_space<vmem>>) attributes {dimension_semantics = [#tpu.dimension_semantics<arbitrary>], iteration_bounds = array<i64: 1>, scalar_prefetch = 0 : i64, scratch_operands = 0 : i64, tpu.core_type = #tpu.core_type<tc>, window_params = [{transform_indices = @transform_0, window_bounds = array<i64: 128, 128>}, {pipeline_mode = #tpu.pipeline_mode<synchronous>, transform_indices = @transform_1, window_bounds = array<i64: 8, 128>}]} {
    %c0_i32 = arith.constant 0 : i32
    %0 = arith.cmpi eq, %arg0, %c0_i32 : i32
    %1 = arith.extui %0 : i1 to i32
    %c0_i32_0 = arith.constant 0 : i32
    %2 = arith.cmpi ne, %1, %c0_i32_0 : i32
    scf.if %2 {
      %cst_3 = arith.constant 0.000000e+00 : f32
      %7 = vector.broadcast %cst_3 : f32 to vector<8x128xf32>
      %c0 = arith.constant 0 : index
      %c0_4 = arith.constant 0 : index
      %8 = vector.load %arg2[%c0, %c0_4] : memref<8x128xf32, #tpu.memory_space<vmem>>, vector<8x128xf32>
      tpu.vector_store %arg2[%c0, %c0_4], %7 {strides = array<i32>} : memref<8x128xf32, #tpu.memory_space<vmem>>, vector<8x128xf32>,
    } else {
    }
    %cst = arith.constant 0.000000e+00 : f32
    %3 = vector.broadcast %cst : f32 to vector<8x128xf32>
    %c0_i32_1 = arith.constant 0 : i32
    %4 = arith.cmpi sge, %arg0, %c0_i32_1 : i32
    %5 = arith.extui %4 : i1 to i32
    %c0_i32_2 = arith.constant 0 : i32
    %6 = arith.cmpi ne, %5, %c0_i32_2 : i32
    scf.if %6 {
      %7 = tpu.iota {dimensions = array<i32: 0>} : vector<128x128xi32>
      %c128_i32 = arith.constant 128 : i32
      %8 = vector.broadcast %c128_i32 : i32 to vector<128x128xi32>
      %9 = arith.muli %7, %8 : vector<128x128xi32>
      %10 = tpu.iota {dimensions = array<i32: 1>} : vector<128x128xi32>
      %11 = arith.addi %9, %10 : vector<128x128xi32>
      %c16384_i32 = arith.constant 16384 : i32
      %12 = arith.muli %arg0, %c16384_i32 : i32
      %c0 = arith.constant 0 : index
      %c0_3 = arith.constant 0 : index
      %13 = vector.load %arg2[%c0, %c0_3] : memref<8x128xf32, #tpu.memory_space<vmem>>, vector<8x128xf32>
      %c0_i32_4 = arith.constant 0 : i32
      %c128_i32_5 = arith.constant 128 : i32
      %14 = arith.muli %c0_i32_4, %c128_i32_5 : i32
      %15 = tpu.assume_multiple %14, 128 : i32
      %16 = arith.index_cast %15 : i32 to index
      %c0_6 = arith.constant 0 : index
      %17 = vector.load %arg1[%16, %c0_6] : memref<128x128xf32, #tpu.memory_space<vmem>>, vector<128x128xf32>
      %cst_7 = arith.constant 0.000000e+00 : f32
      %18 = vector.broadcast %cst_7 : f32 to vector<128x128xf32>
      %19 = arith.maximumf %17, %18 : vector<128x128xf32>
      %cst_8 = arith.constant 1.000000e+00 : f32
      %20 = vector.broadcast %cst_8 : f32 to vector<128x128xf32>
      %21 = arith.mulf %17, %20 : vector<128x128xf32>
      %22 = arith.subf %19, %21 : vector<128x128xf32>
      %23 = math.absf %17 : vector<128x128xf32>
      %cst_9 = arith.constant 0.000000e+00 : f32
      %24 = vector.broadcast %cst_9 : f32 to vector<128x128xf32>
      %25 = arith.subf %24, %23 : vector<128x128xf32>
      %26 = math.exp %25 : vector<128x128xf32>
      %27 = math.log1p %26 : vector<128x128xf32>
      %28 = arith.addf %22, %27 : vector<128x128xf32>
      %c16384_i32_10 = arith.constant 16384 : i32
      %29 = arith.muli %c0_i32_4, %c16384_i32_10 : i32
      %30 = arith.addi %12, %29 : i32
      %31 = vector.broadcast %30 : i32 to vector<128x128xi32>
      %32 = arith.addi %31, %11 : vector<128x128xi32>
      %c2048_i32 = arith.constant 2048 : i32
      %33 = vector.broadcast %c2048_i32 : i32 to vector<128x128xi32>
      %34 = arith.cmpi slt, %32, %33 : vector<128x128xi32>
      %cst_11 = arith.constant 0.000000e+00 : f32
      %35 = vector.broadcast %cst_11 : f32 to vector<128x128xf32>
      %36 = arith.select %34, %28, %35 : vector<128x128xi1>, vector<128x128xf32>
      %37 = vector.shape_cast %36 : vector<128x128xf32> to vector<16x8x128xf32>
      %cst_12 = arith.constant dense<0.000000e+00> : vector<8x128xf32>
      %38 = vector.multi_reduction <add>, %37, %cst_12 [0] : vector<16x8x128xf32> to vector<8x128xf32>
      %39 = arith.addf %3, %38 : vector<8x128xf32>
      %c1_i32 = arith.constant 1 : i32
      %40 = arith.addf %13, %39 : vector<8x128xf32>
      %c0_13 = arith.constant 0 : index
      %c0_14 = arith.constant 0 : index
      %41 = vector.load %arg2[%c0_13, %c0_14] : memref<8x128xf32, #tpu.memory_space<vmem>>, vector<8x128xf32>
      tpu.vector_store %arg2[%c0_13, %c0_14], %40 {strides = array<i32>} : memref<8x128xf32, #tpu.memory_space<vmem>>, vector<8x128xf32>,
    } else {
    }
    return
  }
  func.func @transform_0(%arg0: i32) -> (i32, i32) {
    %c0_i32 = arith.constant 0 : i32
    %c0_i32_0 = arith.constant 0 : i32
    return %arg0, %c0_i32 : i32, i32
  }
  func.func @transform_1(%arg0: i32) -> (i32, i32) {
    %c0_i32 = arith.constant 0 : i32
    %c0_i32_0 = arith.constant 0 : i32
    %c0_i32_1 = arith.constant 0 : i32
    return %c0_i32, %c0_i32_0 : i32, i32
  }
}

</mosaic_0001>

<llo_original>
// kernel: tpu_custom_call.1
$region0: #{tpu_custom_call.1}
  #allocation0 [shape = 'u32[]', space=smem, size = 0x4, offset = 0x4, fixed_abs, tag = 'smem constant byte address 0x4 - core index']
  #allocation1 [shape = 'u32[72,128]{1,0:T(1,128)}', space=vmem, size = 0x9000, scoped, tag = 'internal scratch']
  %s0 = inlined_call_operand.hbm [shape: f32[128,128], index: 0, kind: input, shape index: {}]
  %s1 = inlined_call_operand.hbm [shape: f32[8,128], index: 1, kind: output, shape index: {}]
  %s2 = sld [smem:[#allocation0]]
  $region26: #{tpu_custom_call.1} parent=0
    _
  %s4 = ssub.s32 1, %s2
  %s5 = scalar_select 0, %s4, %s2
  $region1: #{tpu_custom_call.1} parent=0
    #allocation2 [shape = 'u8[65536]{0}', space=vmem, size = 0x10000, scoped, tag = 'input window, operand 0, single buffered']
    #allocation3 [shape = 's32[1]{0}', space=sflag, size = 0x4, scoped, tag = 'scoped memory for tpu_custom_call.1']
    #allocation4 [shape = 's32[1]{0}', space=sflag, size = 0x4, scoped, tag = 'scoped memory for tpu_custom_call.1']
    #allocation5 [shape = 'u8[4096]{0}', space=vmem, size = 0x1000, scoped, tag = 'output window, operand 0, single buffered']
    %6 = vsyncpa [#allocation3], 0
    %7 = vsyncpa [#allocation4], 0
    // Predicated region
    $region2: #{tpu_custom_call.1} parent=1 // pred_check
      _
    $region3: #{tpu_custom_call.1} parent=1 // pred_check_branch
      %9 = sbr.rel (0) target = $region5
    $region4: #{tpu_custom_call.1} parent=1 // pred_region
      %11 = vsyncadd [#allocation3], 0
      %s12 = sshll.u32 %s0, 4
      %s13 = int_to_ptr.hbm [resolvable:$true] %s12
      %s14 = sshll.u32 [#allocation2], 4
      %s15 = int_to_ptr.vmem [resolvable:$true] %s14
      %20 = dma.hbm_to_vmem [thread:$0]  %s13, 2048, %s15, [#allocation3], 128, 128, 8
    $region5: #{tpu_custom_call.1} parent=1 // pred_fallthru
      _
    // Predicated region
    $region6: #{tpu_custom_call.1} parent=1 // pred_check
      _
    $region7: #{tpu_custom_call.1} parent=1 // pred_check_branch
      %22 = sbr.rel (0) target = $region9
    $region8: #{tpu_custom_call.1} parent=1 // pred_region
      %24 = dma.done [#allocation3], 2048
    $region9: #{tpu_custom_call.1} parent=1 // pred_fallthru
      _
    %p25 = scmp.eq.s32.totalorder 0, 0
    // Predicated region
    $region10: #{tpu_custom_call.1} parent=1 // pred_check
      %p26 = pneg %p25
    $region11: #{tpu_custom_call.1} parent=1 // pred_check_branch
      %28 = sbr.rel (%p26) target = $region13
    $region12: #{tpu_custom_call.1} parent=1 // pred_region
      %29 = vst [vmem:[#allocation5] sm:$0xff] 0.0
    $region13: #{tpu_custom_call.1} parent=1 // pred_fallthru
      _
    %p30 = scmp.ge.s32.totalorder 0, 0
    // Predicated region
    $region14: #{tpu_custom_call.1} parent=1 // pred_check
      %p31 = pneg %p30
    $region15: #{tpu_custom_call.1} parent=1 // pred_check_branch
      %33 = sbr.rel (%p31) target = $region17
    $region16: #{tpu_custom_call.1} parent=1 // pred_region
      %v34 = vlaneseq
      %v35 = vshrl.u32 %v34, 7
      %v36 = vadd.s32 %v35, 8
      %v37 = vadd.s32 %v35, 16
      %v38 = vadd.s32 %v35, 24
      %v39 = vadd.s32 %v35, 32
      %v40 = vadd.s32 %v35, 40
      %v41 = vadd.s32 %v35, 48
      %v42 = vadd.s32 %v35, 56
      %v43 = vadd.s32 %v35, 64
      %v44 = vadd.s32 %v35, 72
      %v45 = vadd.s32 %v35, 80
      %v46 = vadd.s32 %v35, 88
      %v47 = vadd.s32 %v35, 96
      %v48 = vadd.s32 %v35, 104
      %v49 = vadd.s32 %v35, 112
      %v50 = vadd.s32 %v35, 120
      %v51 = vmul.u32 %v35, 128
      %v52 = vmul.u32 %v36, 128
      %v53 = vmul.u32 %v37, 128
      %v54 = vmul.u32 %v38, 128
      %v55 = vmul.u32 %v39, 128
      %v56 = vmul.u32 %v40, 128
      %v57 = vmul.u32 %v41, 128
      %v58 = vmul.u32 %v42, 128
      %v59 = vmul.u32 %v43, 128
      %v60 = vmul.u32 %v44, 128
      %v61 = vmul.u32 %v45, 128
      %v62 = vmul.u32 %v46, 128
      %v63 = vmul.u32 %v47, 128
      %v64 = vmul.u32 %v48, 128
      %v65 = vmul.u32 %v49, 128
      %v66 = vmul.u32 %v50, 128
      %v67 = vlaneseq
      %v68 = vand.u32 %v67, 127
      %v69 = vadd.s32 %v51, %v68
      %v70 = vadd.s32 %v52, %v68
      %v71 = vadd.s32 %v53, %v68
      %v72 = vadd.s32 %v54, %v68
      %v73 = vadd.s32 %v55, %v68
      %v74 = vadd.s32 %v56, %v68
      %v75 = vadd.s32 %v57, %v68
      %v76 = vadd.s32 %v58, %v68
      %v77 = vadd.s32 %v59, %v68
      %v78 = vadd.s32 %v60, %v68
      %v79 = vadd.s32 %v61, %v68
      %v80 = vadd.s32 %v62, %v68
      %v81 = vadd.s32 %v63, %v68
      %v82 = vadd.s32 %v64, %v68
      %v83 = vadd.s32 %v65, %v68
      %v84 = vadd.s32 %v66, %v68
      %s85 = smul.u32 0, 16384
      %v86 = vld [vmem:[#allocation5] sm:$0xff]
      %v87 = vld [vmem:[#allocation2] sm:$0xff]
      %v88 = vld [vmem:[#allocation2 + $0x8] sm:$0xff]
      %v89 = vld [vmem:[#allocation2 + $0x10] sm:$0xff]
      %v90 = vld [vmem:[#allocation2 + $0x18] sm:$0xff]
      %v91 = vld [vmem:[#allocation2 + $0x20] sm:$0xff]
      %v92 = vld [vmem:[#allocation2 + $0x28] sm:$0xff]
      %v93 = vld [vmem:[#allocation2 + $0x30] sm:$0xff]
      %v94 = vld [vmem:[#allocation2 + $0x38] sm:$0xff]
      %v95 = vld [vmem:[#allocation2 + $0x40] sm:$0xff]
      %v96 = vld [vmem:[#allocation2 + $0x48] sm:$0xff]
      %v97 = vld [vmem:[#allocation2 + $0x50] sm:$0xff]
      %v98 = vld [vmem:[#allocation2 + $0x58] sm:$0xff]
      %v99 = vld [vmem:[#allocation2 + $0x60] sm:$0xff]
      %v100 = vld [vmem:[#allocation2 + $0x68] sm:$0xff]
      %v101 = vld [vmem:[#allocation2 + $0x70] sm:$0xff]
      %v102 = vld [vmem:[#allocation2 + $0x78] sm:$0xff]
      %v103 = vmax.f32 %v87, 0.0
      %v104 = vmax.f32 %v88, 0.0
      %v105 = vmax.f32 %v89, 0.0
      %v106 = vmax.f32 %v90, 0.0
      %v107 = vmax.f32 %v91, 0.0
      %v108 = vmax.f32 %v92, 0.0
      %v109 = vmax.f32 %v93, 0.0
      %v110 = vmax.f32 %v94, 0.0
      %v111 = vmax.f32 %v95, 0.0
      %v112 = vmax.f32 %v96, 0.0
      %v113 = vmax.f32 %v97, 0.0
      %v114 = vmax.f32 %v98, 0.0
      %v115 = vmax.f32 %v99, 0.0
      %v116 = vmax.f32 %v100, 0.0
      %v117 = vmax.f32 %v101, 0.0
      %v118 = vmax.f32 %v102, 0.0
      %v119 = vsub.f32 %v103, %v87
      %v120 = vsub.f32 %v104, %v88
      %v121 = vsub.f32 %v105, %v89
      %v122 = vsub.f32 %v106, %v90
      %v123 = vsub.f32 %v107, %v91
      %v124 = vsub.f32 %v108, %v92
      %v125 = vsub.f32 %v109, %v93
      %v126 = vsub.f32 %v110, %v94
      %v127 = vsub.f32 %v111, %v95
      %v128 = vsub.f32 %v112, %v96
      %v129 = vsub.f32 %v113, %v97
      %v130 = vsub.f32 %v114, %v98
      %v131 = vsub.f32 %v115, %v99
      %v132 = vsub.f32 %v116, %v100
      %v133 = vsub.f32 %v117, %v101
      %v134 = vsub.f32 %v118, %v102
      %v135 = vand.u32 2147483647, %v87
      %v136 = vand.u32 2147483647, %v88
      %v137 = vand.u32 2147483647, %v89
      %v138 = vand.u32 2147483647, %v90
      %v139 = vand.u32 2147483647, %v91
      %v140 = vand.u32 2147483647, %v92
      %v141 = vand.u32 2147483647, %v93
      %v142 = vand.u32 2147483647, %v94
      %v143 = vand.u32 2147483647, %v95
      %v144 = vand.u32 2147483647, %v96
      %v145 = vand.u32 2147483647, %v97
      %v146 = vand.u32 2147483647, %v98
      %v147 = vand.u32 2147483647, %v99
      %v148 = vand.u32 2147483647, %v100
      %v149 = vand.u32 2147483647, %v101
      %v150 = vand.u32 2147483647, %v102
      %v151 = vsub.f32 0.0, %v135
      %v152 = vsub.f32 0.0, %v136
      %v153 = vsub.f32 0.0, %v137
      %v154 = vsub.f32 0.0, %v138
      %v155 = vsub.f32 0.0, %v139
      %v156 = vsub.f32 0.0, %v140
      %v157 = vsub.f32 0.0, %v141
      %v158 = vsub.f32 0.0, %v142
      %v159 = vsub.f32 0.0, %v143
      %v160 = vsub.f32 0.0, %v144
      %v161 = vsub.f32 0.0, %v145
      %v162 = vsub.f32 0.0, %v146
      %v163 = vsub.f32 0.0, %v147
      %v164 = vsub.f32 0.0, %v148
      %v165 = vsub.f32 0.0, %v149
      %v166 = vsub.f32 0.0, %v150
      %v167 = vmul.f32 %v151, 1.442695
      %v168 = vpow.pop %v167
      %v169 = vmul.f32 %v152, 1.442695
      %v170 = vpow.pop %v169
      %v171 = vmul.f32 %v153, 1.442695
      %v172 = vpow.pop %v171
      %v173 = vmul.f32 %v154, 1.442695
      %v174 = vpow.pop %v173
      %v175 = vmul.f32 %v155, 1.442695
      %v176 = vpow.pop %v175
      %v177 = vmul.f32 %v156, 1.442695
      %v178 = vpow.pop %v177
      %v179 = vmul.f32 %v157, 1.442695
      %v180 = vpow.pop %v179
      %v181 = vmul.f32 %v158, 1.442695
      %v182 = vpow.pop %v181
      %v183 = vmul.f32 %v159, 1.442695
      %v184 = vpow.pop %v183
      %v185 = vmul.f32 %v160, 1.442695
      %v186 = vpow.pop %v185
      %v187 = vmul.f32 %v161, 1.442695
      %v188 = vpow.pop %v187
      %v189 = vmul.f32 %v162, 1.442695
      %v190 = vpow.pop %v189
      %v191 = vmul.f32 %v163, 1.442695
      %v192 = vpow.pop %v191
      %v193 = vmul.f32 %v164, 1.442695
      %v194 = vpow.pop %v193
      %v195 = vmul.f32 %v165, 1.442695
      %v196 = vpow.pop %v195
      %v197 = vmul.f32 %v166, 1.442695
      %v198 = vpow.pop %v197
      %v199 = vadd.f32 %v168, 1.0
      %v200 = vlog2.pop %v199
      %v201 = vmul.f32 %v200, 0.6931472
      %v202 = vmul.f32 -0.5, %v168
      %v203 = vadd.f32 %v202, 1.0
      %v204 = vmul.f32 %v203, %v168
      %v205 = vand.u32 2147483647, %v168
      %vm206 = vcmp.lt.f32.partialorder %v205, 0.0004427343
      %v207 = vsel %vm206, %v204, %v201
      %v208 = vadd.f32 %v170, 1.0
      %v209 = vlog2.pop %v208
      %v210 = vmul.f32 %v209, 0.6931472
      %v211 = vmul.f32 -0.5, %v170
      %v212 = vadd.f32 %v211, 1.0
      %v213 = vmul.f32 %v212, %v170
      %v214 = vand.u32 2147483647, %v170
      %vm215 = vcmp.lt.f32.partialorder %v214, 0.0004427343
      %v216 = vsel %vm215, %v213, %v210
      %v217 = vadd.f32 %v172, 1.0
      %v218 = vlog2.pop %v217
      %v219 = vmul.f32 %v218, 0.6931472
      %v220 = vmul.f32 -0.5, %v172
      %v221 = vadd.f32 %v220, 1.0
      %v222 = vmul.f32 %v221, %v172
      %v223 = vand.u32 2147483647, %v172
      %vm224 = vcmp.lt.f32.partialorder %v223, 0.0004427343
      %v225 = vsel %vm224, %v222, %v219
      %v226 = vadd.f32 %v174, 1.0
      %v227 = vlog2.pop %v226
      %v228 = vmul.f32 %v227, 0.6931472
      %v229 = vmul.f32 -0.5, %v174
      %v230 = vadd.f32 %v229, 1.0
      %v231 = vmul.f32 %v230, %v174
      %v232 = vand.u32 2147483647, %v174
      %vm233 = vcmp.lt.f32.partialorder %v232, 0.0004427343
      %v234 = vsel %vm233, %v231, %v228
      %v235 = vadd.f32 %v176, 1.0
      %v236 = vlog2.pop %v235
      %v237 = vmul.f32 %v236, 0.6931472
      %v238 = vmul.f32 -0.5, %v176
      %v239 = vadd.f32 %v238, 1.0
      %v240 = vmul.f32 %v239, %v176
      %v241 = vand.u32 2147483647, %v176
      %vm242 = vcmp.lt.f32.partialorder %v241, 0.0004427343
      %v243 = vsel %vm242, %v240, %v237
      %v244 = vadd.f32 %v178, 1.0
      %v245 = vlog2.pop %v244
      %v246 = vmul.f32 %v245, 0.6931472
      %v247 = vmul.f32 -0.5, %v178
      %v248 = vadd.f32 %v247, 1.0
      %v249 = vmul.f32 %v248, %v178
      %v250 = vand.u32 2147483647, %v178
      %vm251 = vcmp.lt.f32.partialorder %v250, 0.0004427343
      %v252 = vsel %vm251, %v249, %v246
      %v253 = vadd.f32 %v180, 1.0
      %v254 = vlog2.pop %v253
      %v255 = vmul.f32 %v254, 0.6931472
      %v256 = vmul.f32 -0.5, %v180
      %v257 = vadd.f32 %v256, 1.0
      %v258 = vmul.f32 %v257, %v180
      %v259 = vand.u32 2147483647, %v180
      %vm260 = vcmp.lt.f32.partialorder %v259, 0.0004427343
      %v261 = vsel %vm260, %v258, %v255
      %v262 = vadd.f32 %v182, 1.0
      %v263 = vlog2.pop %v262
      %v264 = vmul.f32 %v263, 0.6931472
      %v265 = vmul.f32 -0.5, %v182
      %v266 = vadd.f32 %v265, 1.0
      %v267 = vmul.f32 %v266, %v182
      %v268 = vand.u32 2147483647, %v182
      %vm269 = vcmp.lt.f32.partialorder %v268, 0.0004427343
      %v270 = vsel %vm269, %v267, %v264
      %v271 = vadd.f32 %v184, 1.0
      %v272 = vlog2.pop %v271
      %v273 = vmul.f32 %v272, 0.6931472
      %v274 = vmul.f32 -0.5, %v184
      %v275 = vadd.f32 %v274, 1.0
      %v276 = vmul.f32 %v275, %v184
      %v277 = vand.u32 2147483647, %v184
      %vm278 = vcmp.lt.f32.partialorder %v277, 0.0004427343
      %v279 = vsel %vm278, %v276, %v273
      %v280 = vadd.f32 %v186, 1.0
      %v281 = vlog2.pop %v280
      %v282 = vmul.f32 %v281, 0.6931472
      %v283 = vmul.f32 -0.5, %v186
      %v284 = vadd.f32 %v283, 1.0
      %v285 = vmul.f32 %v284, %v186
      %v286 = vand.u32 2147483647, %v186
      %vm287 = vcmp.lt.f32.partialorder %v286, 0.0004427343
      %v288 = vsel %vm287, %v285, %v282
      %v289 = vadd.f32 %v188, 1.0
      %v290 = vlog2.pop %v289
      %v291 = vmul.f32 %v290, 0.6931472
      %v292 = vmul.f32 -0.5, %v188
      %v293 = vadd.f32 %v292, 1.0
      %v294 = vmul.f32 %v293, %v188
      %v295 = vand.u32 2147483647, %v188
      %vm296 = vcmp.lt.f32.partialorder %v295, 0.0004427343
      %v297 = vsel %vm296, %v294, %v291
      %v298 = vadd.f32 %v190, 1.0
      %v299 = vlog2.pop %v298
      %v300 = vmul.f32 %v299, 0.6931472
      %v301 = vmul.f32 -0.5, %v190
      %v302 = vadd.f32 %v301, 1.0
      %v303 = vmul.f32 %v302, %v190
      %v304 = vand.u32 2147483647, %v190
      %vm305 = vcmp.lt.f32.partialorder %v304, 0.0004427343
      %v306 = vsel %vm305, %v303, %v300
      %v307 = vadd.f32 %v192, 1.0
      %v308 = vlog2.pop %v307
      %v309 = vmul.f32 %v308, 0.6931472
      %v310 = vmul.f32 -0.5, %v192
      %v311 = vadd.f32 %v310, 1.0
      %v312 = vmul.f32 %v311, %v192
      %v313 = vand.u32 2147483647, %v192
      %vm314 = vcmp.lt.f32.partialorder %v313, 0.0004427343
      %v315 = vsel %vm314, %v312, %v309
      %v316 = vadd.f32 %v194, 1.0
      %v317 = vlog2.pop %v316
      %v318 = vmul.f32 %v317, 0.6931472
      %v319 = vmul.f32 -0.5, %v194
      %v320 = vadd.f32 %v319, 1.0
      %v321 = vmul.f32 %v320, %v194
      %v322 = vand.u32 2147483647, %v194
      %vm323 = vcmp.lt.f32.partialorder %v322, 0.0004427343
      %v324 = vsel %vm323, %v321, %v318
      %v325 = vadd.f32 %v196, 1.0
      %v326 = vlog2.pop %v325
      %v327 = vmul.f32 %v326, 0.6931472
      %v328 = vmul.f32 -0.5, %v196
      %v329 = vadd.f32 %v328, 1.0
      %v330 = vmul.f32 %v329, %v196
      %v331 = vand.u32 2147483647, %v196
      %vm332 = vcmp.lt.f32.partialorder %v331, 0.0004427343
      %v333 = vsel %vm332, %v330, %v327
      %v334 = vadd.f32 %v198, 1.0
      %v335 = vlog2.pop %v334
      %v336 = vmul.f32 %v335, 0.6931472
      %v337 = vmul.f32 -0.5, %v198
      %v338 = vadd.f32 %v337, 1.0
      %v339 = vmul.f32 %v338, %v198
      %v340 = vand.u32 2147483647, %v198
      %vm341 = vcmp.lt.f32.partialorder %v340, 0.0004427343
      %v342 = vsel %vm341, %v339, %v336
      %v343 = vadd.f32 %v119, %v207
      %v344 = vadd.f32 %v120, %v216
      %v345 = vadd.f32 %v121, %v225
      %v346 = vadd.f32 %v122, %v234
      %v347 = vadd.f32 %v123, %v243
      %v348 = vadd.f32 %v124, %v252
      %v349 = vadd.f32 %v125, %v261
      %v350 = vadd.f32 %v126, %v270
      %v351 = vadd.f32 %v127, %v279
      %v352 = vadd.f32 %v128, %v288
      %v353 = vadd.f32 %v129, %v297
      %v354 = vadd.f32 %v130, %v306
      %v355 = vadd.f32 %v131, %v315
      %v356 = vadd.f32 %v132, %v324
      %v357 = vadd.f32 %v133, %v333
      %v358 = vadd.f32 %v134, %v342
      %v359 = vstv %s85
      %v360 = vadd.s32 %v359, %v69
      %v361 = vadd.s32 %v359, %v70
      %v362 = vadd.s32 %v359, %v71
      %v363 = vadd.s32 %v359, %v72
      %v364 = vadd.s32 %v359, %v73
      %v365 = vadd.s32 %v359, %v74
      %v366 = vadd.s32 %v359, %v75
      %v367 = vadd.s32 %v359, %v76
      %v368 = vadd.s32 %v359, %v77
      %v369 = vadd.s32 %v359, %v78
      %v370 = vadd.s32 %v359, %v79
      %v371 = vadd.s32 %v359, %v80
      %v372 = vadd.s32 %v359, %v81
      %v373 = vadd.s32 %v359, %v82
      %v374 = vadd.s32 %v359, %v83
      %v375 = vadd.s32 %v359, %v84
      %vm376 = vcmp.lt.s32.totalorder %v360, 2048
      %vm377 = vcmp.lt.s32.totalorder %v361, 2048
      %vm378 = vcmp.lt.s32.totalorder %v362, 2048
      %vm379 = vcmp.lt.s32.totalorder %v363, 2048
      %vm380 = vcmp.lt.s32.totalorder %v364, 2048
      %vm381 = vcmp.lt.s32.totalorder %v365, 2048
      %vm382 = vcmp.lt.s32.totalorder %v366, 2048
      %vm383 = vcmp.lt.s32.totalorder %v367, 2048
      %vm384 = vcmp.lt.s32.totalorder %v368, 2048
      %vm385 = vcmp.lt.s32.totalorder %v369, 2048
      %vm386 = vcmp.lt.s32.totalorder %v370, 2048
      %vm387 = vcmp.lt.s32.totalorder %v371, 2048
      %vm388 = vcmp.lt.s32.totalorder %v372, 2048
      %vm389 = vcmp.lt.s32.totalorder %v373, 2048
      %vm390 = vcmp.lt.s32.totalorder %v374, 2048
      %vm391 = vcmp.lt.s32.totalorder %v375, 2048
      %v392 = vsel %vm376, %v343, 0.0
      %v393 = vsel %vm377, %v344, 0.0
      %v394 = vsel %vm378, %v345, 0.0
      %v395 = vsel %vm379, %v346, 0.0
      %v396 = vsel %vm380, %v347, 0.0
      %v397 = vsel %vm381, %v348, 0.0
      %v398 = vsel %vm382, %v349, 0.0
      %v399 = vsel %vm383, %v350, 0.0
      %v400 = vsel %vm384, %v351, 0.0
      %v401 = vsel %vm385, %v352, 0.0
      %v402 = vsel %vm386, %v353, 0.0
      %v403 = vsel %vm387, %v354, 0.0
      %v404 = vsel %vm388, %v355, 0.0
      %v405 = vsel %vm389, %v356, 0.0
      %v406 = vsel %vm390, %v357, 0.0
      %v407 = vsel %vm391, %v358, 0.0
      %v408 = vadd.f32 %v392, %v393
      %v409 = vadd.f32 %v408, %v394
      %v410 = vadd.f32 %v409, %v395
      %v411 = vadd.f32 %v410, %v396
      %v412 = vadd.f32 %v411, %v397
      %v413 = vadd.f32 %v412, %v398
      %v414 = vadd.f32 %v413, %v399
      %v415 = vadd.f32 %v414, %v400
      %v416 = vadd.f32 %v415, %v401
      %v417 = vadd.f32 %v416, %v402
      %v418 = vadd.f32 %v417, %v403
      %v419 = vadd.f32 %v418, %v404
      %v420 = vadd.f32 %v419, %v405
      %v421 = vadd.f32 %v420, %v406
      %v422 = vadd.f32 %v421, %v407
      %v423 = vadd.f32 %v422, 0.0
      %v424 = vadd.f32 %v86, %v423
      %425 = vst [vmem:[#allocation5] sm:$0xff] %v424
    $region17: #{tpu_custom_call.1} parent=1 // pred_fallthru
      _
    // Predicated region
    $region18: #{tpu_custom_call.1} parent=1 // pred_check
      _
    $region19: #{tpu_custom_call.1} parent=1 // pred_check_branch
      %427 = sbr.rel (0) target = $region21
    $region20: #{tpu_custom_call.1} parent=1 // pred_region
      %429 = vsyncadd [#allocation4], 0
      %s431 = sshll.u32 [#allocation5], 4
      %s432 = int_to_ptr.vmem [resolvable:$true] %s431
      %s433 = sshll.u32 %s1, 4
      %s434 = int_to_ptr.hbm [resolvable:$true] %s433
      %436 = dma.vmem_to_hbm [thread:$0]  %s432, 128, %s434, [#allocation4]
    $region21: #{tpu_custom_call.1} parent=1 // pred_fallthru
      _
    // Predicated region
    $region22: #{tpu_custom_call.1} parent=1 // pred_check
      _
    $region23: #{tpu_custom_call.1} parent=1 // pred_check_branch
      %438 = sbr.rel (0) target = $region25
    $region24: #{tpu_custom_call.1} parent=1 // pred_region
      %440 = dma.done [#allocation4], 128
    $region25: #{tpu_custom_call.1} parent=1 // pred_fallthru
      _
    %441 = vsyncpa [#allocation3], 1
    %442 = vsyncpa [#allocation4], 1

</llo_original>
